<compile_context>
chip_gen: v7x
topology: tpu7x:2x2x1
jax: 0.10.0
libtpu: 0.0.40
codegen_flags: <defaults>
</compile_context>

<pallas_src>
import functools

import jax
import jax.numpy as jnp
from jax import lax
from jax.experimental import pallas as pl
from jax.experimental.pallas import tpu as pltpu


def _round_up(x, m):
    return ((x + m - 1) // m) * m


def _vmem_limit_bytes(default=48 * 1024 * 1024):
    """Pick a scoped-VMEM limit: generous on 128-MiB parts, safe on v7x (64 MiB)."""
    try:
        cap = int(pltpu.get_tpu_info().vmem_capacity_bytes)
        return min(96 * 1024 * 1024, (cap * 3) // 4)
    except Exception:
        return default


# ----------------------------------------------------------------------------
# Kernel 1: positive-edge ComplEx scores  (edge_func)
# ----------------------------------------------------------------------------
def _edge_score_kernel(h_ref, r_ref, t_ref, o_ref):
    D = h_ref.shape[-1]
    Dh = D // 2
    h = h_ref[...].astype(jnp.float32)
    r = r_ref[...].astype(jnp.float32)
    t = t_ref[...].astype(jnp.float32)
    hr, hi = h[:, :Dh], h[:, Dh:]
    rr, ri = r[:, :Dh], r[:, Dh:]
    tr, ti = t[:, :Dh], t[:, Dh:]
    # Factored Re(<h, r, conj(t)>): 6 multiplies per Dh element (was 8).
    score = rr * (hr * tr + hi * ti) + ri * (hr * ti - hi * tr)
    s = jnp.sum(score, axis=-1)            # (TE,)
    o_ref[...] = s.reshape(o_ref.shape)    # lane-dense (8, TE // 8) slab


def edge_score(head, rel, tail, *, block_rows=4096):
    """score[e] = ComplEx(head[e], rel[e], tail[e])   -> shape (E,) float32."""
    E, D = head.shape
    assert D % 2 == 0, "ComplEx requires an even hidden_dim (real/imag halves)"

    vmem_limit = _vmem_limit_bytes()
    budget = (vmem_limit * 2) // 3          # leave headroom for output/pipeline
    itemsize = head.dtype.itemsize
    per_row = 3 * D * itemsize * 2          # 3 streamed inputs, double-buffered
    TE = min(block_rows, max(8, budget // per_row), _round_up(E, 8))
    if TE >= 1024:
        TE = (TE // 1024) * 1024            # keep TE//8 a multiple of 128 lanes
    else:
        TE = max(8, (TE // 8) * 8)

    E_pad = _round_up(E, TE)
    if E_pad != E:
        pad = ((0, E_pad - E), (0, 0))
        head = jnp.pad(head, pad)
        rel = jnp.pad(rel, pad)
        tail = jnp.pad(tail, pad)
    n_tiles = E_pad // TE

    cost = pl.CostEstimate(
        flops=int(5 * E_pad * D),
        transcendentals=0,
        bytes_accessed=int(3 * E_pad * D * itemsize + E_pad * 4),
    )

    out = pl.pallas_call(
        _edge_score_kernel,
        out_shape=jax.ShapeDtypeStruct((n_tiles, 8, TE // 8), jnp.float32),
        grid=(n_tiles,),
        in_specs=[
            pl.BlockSpec((TE, D), lambda i: (i, 0)),
            pl.BlockSpec((TE, D), lambda i: (i, 0)),
            pl.BlockSpec((TE, D), lambda i: (i, 0)),
        ],
        out_specs=pl.BlockSpec((pl.Squeezed(), 8, TE // 8), lambda i: (i, 0, 0)),
        compiler_params=pltpu.CompilerParams(
            dimension_semantics=("parallel",),
            vmem_limit_bytes=vmem_limit,
        ),
        cost_estimate=cost,
    )(head, rel, tail)
    return out.reshape(E_pad)[:E]


# ----------------------------------------------------------------------------
# Kernel 2: negative-sampling ComplEx scores  (create_neg)
#   neg_head=False: pos=heads -> real = pr*rr - pi*ri ; imag = pr*ri + pi*rr
#   neg_head=True : pos=tails -> real = pr*rr + pi*ri ; imag = pi*rr - pr*ri
#   score = bmm(concat(real,imag).view(C,cs,D), neg.view(C,ns,D)^T)
# ----------------------------------------------------------------------------
def _neg_score_kernel(pos_ref, rel_ref, neg_ref, o_ref, tmp_ref, *, neg_head,
                      mxu_dtype):
    D = pos_ref.shape[-1]
    Dh = D // 2

    # Hoisted: complex multiply + concat + cast only depend on (c, m); compute
    # them once per (c, m) into persistent VMEM scratch (n axis is innermost
    # and "arbitrary", so all n tiles of this (c, m) reuse the scratch).
    @pl.when(pl.program_id(2) == 0)
    def _():
        p = pos_ref[...].astype(jnp.float32)
        r = rel_ref[...].astype(jnp.float32)
        pr, pi_ = p[:, :Dh], p[:, Dh:]
        rr, ri = r[:, :Dh], r[:, Dh:]
        if neg_head:
            real = pr * rr + pi_ * ri
            imag = pi_ * rr - pr * ri
        else:
            real = pr * rr - pi_ * ri
            imag = pr * ri + pi_ * rr
        tmp_ref[...] = jnp.concatenate([real, imag], axis=-1).astype(mxu_dtype)

    neg = neg_ref[...].astype(mxu_dtype)          # (TN, D)
    # Contract on the shared last (lane) dim -- no materialized transpose.
    o_ref[...] = lax.dot_general(
        tmp_ref[...],
        neg,
        dimension_numbers=(((1,), (1,)), ((), ())),
        preferred_element_type=jnp.float32,
    )


def neg_score(
    pos_emb,
    rel_emb,
    neg_emb,
    num_chunks,
    chunk_size,
    neg_sample_size,
    *,
    neg_head=False,
    tile_m=512,
    tile_n=512,
    mxu_dtype=jnp.float32,   # float32 keeps parity with the PyTorch fp32 bmm;
                             # pass jnp.bfloat16 for maximum MXU throughput.
):
    """Batched ComplEx negative scores.

    pos_emb : (num_chunks*chunk_size, D)        (heads if neg_head=False else tails)
    rel_emb : (num_chunks*chunk_size, D)
    neg_emb : (num_chunks*neg_sample_size, D)   (tails if neg_head=False else heads)
    returns : (num_chunks, chunk_size, neg_sample_size) float32
    """
    D = pos_emb.shape[1]
    assert D % 2 == 0, "ComplEx requires an even hidden_dim (real/imag halves)"
    pos3 = pos_emb.reshape(num_chunks, chunk_size, D)
    rel3 = rel_emb.reshape(num_chunks, chunk_size, D)
    neg3 = neg_emb.reshape(num_chunks, neg_sample_size, D)

    TM = min(tile_m, _round_up(chunk_size, 8))          # sublane-aligned
    TN = min(tile_n, _round_up(neg_sample_size, 128))   # lane-dense output tiles
    cs_pad = _round_up(chunk_size, TM)
    ns_pad = _round_up(neg_sample_size, TN)
    if cs_pad != chunk_size:
        pad = ((0, 0), (0, cs_pad - chunk_size), (0, 0))
        pos3 = jnp.pad(pos3, pad)
        rel3 = jnp.pad(rel3, pad)
    if ns_pad != neg_sample_size:
        neg3 = jnp.pad(neg3, ((0, 0), (0, ns_pad - neg_sample_size), (0, 0)))

    kernel = functools.partial(
        _neg_score_kernel, neg_head=neg_head, mxu_dtype=mxu_dtype
    )
    itemsize = pos_emb.dtype.itemsize
    cost = pl.CostEstimate(
        flops=int(2 * num_chunks * cs_pad * ns_pad * D),
        transcendentals=0,
        bytes_accessed=int(
            itemsize * (2 * num_chunks * cs_pad * D                       # pos+rel
                        + num_chunks * (cs_pad // TM) * ns_pad * D)       # neg re-reads
            + 4 * num_chunks * cs_pad * ns_pad                            # output
        ),
    )

    out = pl.pallas_call(
        kernel,
        out_shape=jax.ShapeDtypeStruct((num_chunks, cs_pad, ns_pad), jnp.float32),
        grid=(num_chunks, cs_pad // TM, ns_pad // TN),
        in_specs=[
            pl.BlockSpec((pl.Squeezed(), TM, D), lambda c, m, n: (c, m, 0)),
            pl.BlockSpec((pl.Squeezed(), TM, D), lambda c, m, n: (c, m, 0)),
            pl.BlockSpec((pl.Squeezed(), TN, D), lambda c, m, n: (c, n, 0)),
        ],
        out_specs=pl.BlockSpec(
            (pl.Squeezed(), TM, TN), lambda c, m, n: (c, m, n)
        ),
        scratch_shapes=[pltpu.VMEM((TM, D), mxu_dtype)],
        compiler_params=pltpu.CompilerParams(
            # c, m stay parallel (megacore on v7x); n is arbitrary so the
            # hoisted scratch is valid across the inner n loop.
            dimension_semantics=("parallel", "parallel", "arbitrary"),
            vmem_limit_bytes=_vmem_limit_bytes(),
        ),
        cost_estimate=cost,
    )(pos3, rel3, neg3)
    if cs_pad != chunk_size or ns_pad != neg_sample_size:
        out = out[:, :chunk_size, :neg_sample_size]
    return out


# ----------------------------------------------------------------------------
# Pure-JAX references (mirror the PyTorch module, f32)
# ----------------------------------------------------------------------------
def _edge_ref(h, r, t):
    Dh = h.shape[-1] // 2
    hr, hi = h[:, :Dh], h[:, Dh:]
    rr, ri = r[:, :Dh], r[:, Dh:]
    tr, ti = t[:, :Dh], t[:, Dh:]
    return jnp.sum(hr * tr * rr + hi * ti * rr + hr * ti * ri - hi * tr * ri, axis=-1)


def _neg_ref(pos, rel, neg, C, cs, ns, neg_head):
    D = pos.shape[1]
    Dh = D // 2
    pr, pi_ = pos[:, :Dh], pos[:, Dh:]
    rr, ri = rel[:, :Dh], rel[:, Dh:]
    if neg_head:
        real = pr * rr + pi_ * ri
        imag = pi_ * rr - pr * ri
    else:
        real = pr * rr - pi_ * ri
        imag = pr * ri + pi_ * rr
    tmp = jnp.concatenate([real, imag], axis=-1).reshape(C, cs, D)
    negr = neg.reshape(C, ns, D)
    return jnp.einsum("bcd,bnd->bcn", tmp, negr)


# ----------------------------------------------------------------------------
# Demo / self-check
# ----------------------------------------------------------------------------
if __name__ == "__main__":
    key = jax.random.PRNGKey(0)
    k1, k2, k3, k4, k5, k6 = jax.random.split(key, 6)

    hidden_dim = 32          # must be even (real/imag halves)
    num_edges = 16
    num_chunks = 2
    chunk_size = 8
    neg_sample_size = 8

    # --- positive-edge path (edge_func) ---
    head = jax.random.normal(k1, (num_edges, hidden_dim), dtype=jnp.float32)
    rel = jax.random.normal(k2, (num_edges, hidden_dim), dtype=jnp.float32)
    tail = jax.random.normal(k3, (num_edges, hidden_dim), dtype=jnp.float32)

    pos_scores = jax.block_until_ready(edge_score(head, rel, tail))
    ref_pos = _edge_ref(head, rel, tail)
    assert pos_scores.shape == (num_edges,)
    assert jnp.allclose(pos_scores, ref_pos, atol=1e-4, rtol=1e-4)

    # --- negative-sampling path, neg_head=False (corrupt tails) ---
    heads_n = jax.random.normal(k4, (num_chunks * chunk_size, hidden_dim), jnp.float32)
    rels_n = jax.random.normal(k5, (num_chunks * chunk_size, hidden_dim), jnp.float32)
    tails_n = jax.random.normal(
        k6, (num_chunks * neg_sample_size, hidden_dim), jnp.float32
    )

    neg_t = jax.block_until_ready(
        neg_score(
            heads_n, rels_n, tails_n, num_chunks, chunk_size, neg_sample_size,
            neg_head=False,
        )
    )
    ref_t = _neg_ref(
        heads_n, rels_n, tails_n, num_chunks, chunk_size, neg_sample_size, False
    )
    assert neg_t.shape == (num_chunks, chunk_size, neg_sample_size)
    assert jnp.allclose(neg_t, ref_t, atol=1e-2, rtol=1e-2)

    # --- negative-sampling path, neg_head=True (corrupt heads) ---
    # positive side = tails (C*cs rows), negatives = heads (C*ns rows);
    # cs == ns in this demo so the same arrays can play both roles.
    neg_h = jax.block_until_ready(
        neg_score(
            tails_n, rels_n, heads_n, num_chunks, chunk_size, neg_sample_size,
            neg_head=True,
        )
    )
    ref_h = _neg_ref(
        tails_n, rels_n, heads_n, num_chunks, chunk_size, neg_sample_size, True
    )
    assert neg_h.shape == (num_chunks, chunk_size, neg_sample_size)
    assert jnp.allclose(neg_h, ref_h, atol=1e-2, rtol=1e-2)

    print("KERNEL_OK")
</pallas_src>

<mosaic_0001>
module attributes {stable_mosaic.version = 11 : i64} {
  func.func @_edge_score_kernel(%arg0: i32, %arg1: memref<16x32xf32, #tpu.memory_space<vmem>>, %arg2: memref<16x32xf32, #tpu.memory_space<vmem>>, %arg3: memref<16x32xf32, #tpu.memory_space<vmem>>, %arg4: memref<1x8x2xf32, #tpu.memory_space<vmem>>) attributes {dimension_semantics = [#tpu.dimension_semantics<parallel>], iteration_bounds = array<i64: 1>, scalar_prefetch = 0 : i64, scratch_operands = 0 : i64, tpu.core_type = #tpu.core_type<tc>, window_params = [{transform_indices = @transform_0, window_bounds = array<i64: 16, 32>}, {transform_indices = @transform_1, window_bounds = array<i64: 16, 32>}, {transform_indices = @transform_2, window_bounds = array<i64: 16, 32>}, {transform_indices = @transform_3, window_bounds = array<i64: 1, 8, 2>}]} {
    %c0 = arith.constant 0 : index
    %c0_0 = arith.constant 0 : index
    %0 = vector.load %arg1[%c0, %c0_0] : memref<16x32xf32, #tpu.memory_space<vmem>>, vector<16x32xf32>
    %c0_1 = arith.constant 0 : index
    %c0_2 = arith.constant 0 : index
    %1 = vector.load %arg2[%c0_1, %c0_2] : memref<16x32xf32, #tpu.memory_space<vmem>>, vector<16x32xf32>
    %c0_3 = arith.constant 0 : index
    %c0_4 = arith.constant 0 : index
    %2 = vector.load %arg3[%c0_3, %c0_4] : memref<16x32xf32, #tpu.memory_space<vmem>>, vector<16x32xf32>
    %3 = vector.extract_strided_slice %0 {offsets = [0, 0], sizes = [16, 16], strides = [1, 1]} : vector<16x32xf32> to vector<16x16xf32>
    %4 = vector.extract_strided_slice %0 {offsets = [0, 16], sizes = [16, 16], strides = [1, 1]} : vector<16x32xf32> to vector<16x16xf32>
    %5 = vector.extract_strided_slice %1 {offsets = [0, 0], sizes = [16, 16], strides = [1, 1]} : vector<16x32xf32> to vector<16x16xf32>
    %6 = vector.extract_strided_slice %1 {offsets = [0, 16], sizes = [16, 16], strides = [1, 1]} : vector<16x32xf32> to vector<16x16xf32>
    %7 = vector.extract_strided_slice %2 {offsets = [0, 0], sizes = [16, 16], strides = [1, 1]} : vector<16x32xf32> to vector<16x16xf32>
    %8 = vector.extract_strided_slice %2 {offsets = [0, 16], sizes = [16, 16], strides = [1, 1]} : vector<16x32xf32> to vector<16x16xf32>
    %9 = arith.mulf %3, %7 : vector<16x16xf32>
    %10 = arith.mulf %4, %8 : vector<16x16xf32>
    %11 = arith.addf %9, %10 : vector<16x16xf32>
    %12 = arith.mulf %5, %11 : vector<16x16xf32>
    %13 = arith.mulf %3, %8 : vector<16x16xf32>
    %14 = arith.mulf %4, %7 : vector<16x16xf32>
    %15 = arith.subf %13, %14 : vector<16x16xf32>
    %16 = arith.mulf %6, %15 : vector<16x16xf32>
    %17 = arith.addf %12, %16 : vector<16x16xf32>
    %cst = arith.constant dense<0.000000e+00> : vector<16xf32>
    %18 = vector.multi_reduction <add>, %17, %cst [1] : vector<16x16xf32> to vector<16xf32>
    %19 = vector.shape_cast %18 : vector<16xf32> to vector<8x2xf32>
    %c0_5 = arith.constant 0 : index
    %c0_6 = arith.constant 0 : index
    %c0_7 = arith.constant 0 : index
    %20 = vector.load %arg4[%c0_5, %c0_6, %c0_7] : memref<1x8x2xf32, #tpu.memory_space<vmem>>, vector<1x8x2xf32>
    %21 = vector.shape_cast %20 : vector<1x8x2xf32> to vector<8x2xf32>
    %22 = vector.shape_cast %19 : vector<8x2xf32> to vector<1x8x2xf32>
    tpu.vector_store %arg4[%c0_5, %c0_6, %c0_7], %22 {strides = array<i32>} : memref<1x8x2xf32, #tpu.memory_space<vmem>>, vector<1x8x2xf32>,
    return
  }
  func.func @transform_0(%arg0: i32) -> (i32, i32) {
    %c0_i32 = arith.constant 0 : i32
    %c0_i32_0 = arith.constant 0 : i32
    return %arg0, %c0_i32 : i32, i32
  }
  func.func @transform_1(%arg0: i32) -> (i32, i32) {
    %c0_i32 = arith.constant 0 : i32
    %c0_i32_0 = arith.constant 0 : i32
    return %arg0, %c0_i32 : i32, i32
  }
  func.func @transform_2(%arg0: i32) -> (i32, i32) {
    %c0_i32 = arith.constant 0 : i32
    %c0_i32_0 = arith.constant 0 : i32
    return %arg0, %c0_i32 : i32, i32
  }
  func.func @transform_3(%arg0: i32) -> (i32, i32, i32) {
    %c0_i32 = arith.constant 0 : i32
    %c0_i32_0 = arith.constant 0 : i32
    %c0_i32_1 = arith.constant 0 : i32
    return %arg0, %c0_i32, %c0_i32_0 : i32, i32, i32
  }
}

</mosaic_0001>

<llo_original>
// kernel: tpu_custom_call.1
$region0: #{tpu_custom_call.1}
  #allocation0 [shape = 'u32[]', space=smem, size = 0x4, offset = 0x4, fixed_abs, tag = 'smem constant byte address 0x4 - core index']
  #allocation1 [shape = 'u32[144,128]{1,0:T(1,128)}', space=vmem, size = 0x12000, scoped, tag = 'internal scratch']
  %s0 = inlined_call_operand.hbm [shape: f32[16,32], index: 0, kind: input, shape index: {}]
  %s1 = inlined_call_operand.hbm [shape: f32[16,32], index: 1, kind: input, shape index: {}]
  %s2 = inlined_call_operand.hbm [shape: f32[16,32], index: 2, kind: input, shape index: {}]
  %s3 = inlined_call_operand.vmem [shape: f32[1,8,2], index: 3, kind: output, shape index: {}]
  %s4 = sld [smem:[#allocation0]]
  $region34: #{tpu_custom_call.1} parent=0
    _
  %s6 = ssub.s32 1, %s4
  %s7 = scalar_select 0, %s6, %s4
  $region1: #{tpu_custom_call.1} parent=0
    #allocation2 [shape = 'u8[8192]{0}', space=vmem, size = 0x2000, scoped, tag = 'input window, operand 0, single buffered']
    #allocation3 [shape = 's32[1]{0}', space=sflag, size = 0x4, scoped, tag = 'scoped memory for tpu_custom_call.1']
    #allocation4 [shape = 'u8[8192]{0}', space=vmem, size = 0x2000, scoped, tag = 'input window, operand 1, single buffered']
    #allocation5 [shape = 's32[1]{0}', space=sflag, size = 0x4, scoped, tag = 'scoped memory for tpu_custom_call.1']
    #allocation6 [shape = 'u8[8192]{0}', space=vmem, size = 0x2000, scoped, tag = 'input window, operand 2, single buffered']
    %8 = vsyncpa [#allocation3], 0
    %9 = vsyncpa [#allocation5], 0
    // Predicated region
    $region2: #{tpu_custom_call.1} parent=1 // pred_check
      _
    $region3: #{tpu_custom_call.1} parent=1 // pred_check_branch
      %11 = sbr.rel (0) target = $region5
    $region4: #{tpu_custom_call.1} parent=1 // pred_region
      %s13 = ssub.s32 256, 256
      %14 = vsyncadd [#allocation3], %s13
      %s15 = sshll.u32 [#allocation2], 4
      %s16 = int_to_ptr.vmem [resolvable:$true] %s15
      %21 = dma.hbm_to_vmem [thread:$0]  %s0, 256, %s16, [#allocation3], 128, 128, 8
    $region5: #{tpu_custom_call.1} parent=1 // pred_fallthru
      _
    // Predicated region
    $region6: #{tpu_custom_call.1} parent=1 // pred_check
      _
    $region7: #{tpu_custom_call.1} parent=1 // pred_check_branch
      %23 = sbr.rel (0) target = $region9
    $region8: #{tpu_custom_call.1} parent=1 // pred_region
      %s25 = ssub.s32 256, 256
      %26 = vsyncadd [#allocation5], %s25
      %s27 = sshll.u32 [#allocation4], 4
      %s28 = int_to_ptr.vmem [resolvable:$true] %s27
      %33 = dma.hbm_to_vmem [thread:$0]  %s1, 256, %s28, [#allocation5], 128, 128, 8
    $region9: #{tpu_custom_call.1} parent=1 // pred_fallthru
      _
    // Predicated region
    $region10: #{tpu_custom_call.1} parent=1 // pred_check
      _
    $region11: #{tpu_custom_call.1} parent=1 // pred_check_branch
      %35 = sbr.rel (0) target = $region13
    $region12: #{tpu_custom_call.1} parent=1 // pred_region
      %s37 = ssub.s32 256, 256
      %38 = vsyncadd [#allocation5], %s37
      %s39 = sshll.u32 [#allocation6], 4
      %s40 = int_to_ptr.vmem [resolvable:$true] %s39
      %45 = dma.hbm_to_vmem [thread:$0]  %s2, 256, %s40, [#allocation5], 128, 128, 8
    $region13: #{tpu_custom_call.1} parent=1 // pred_fallthru
      _
    // Predicated region
    $region14: #{tpu_custom_call.1} parent=1 // pred_check
      _
    $region15: #{tpu_custom_call.1} parent=1 // pred_check_branch
      %47 = sbr.rel (0) target = $region17
    $region16: #{tpu_custom_call.1} parent=1 // pred_region
      %48 = dma.done [#allocation3], 256
    $region17: #{tpu_custom_call.1} parent=1 // pred_fallthru
      _
    // Predicated region
    $region18: #{tpu_custom_call.1} parent=1 // pred_check
      _
    $region19: #{tpu_custom_call.1} parent=1 // pred_check_branch
      %50 = sbr.rel (0) target = $region21
    $region20: #{tpu_custom_call.1} parent=1 // pred_region
      %51 = dma.done [#allocation5], 256
    $region21: #{tpu_custom_call.1} parent=1 // pred_fallthru
      _
    // Predicated region
    $region22: #{tpu_custom_call.1} parent=1 // pred_check
      _
    $region23: #{tpu_custom_call.1} parent=1 // pred_check_branch
      %53 = sbr.rel (0) target = $region25
    $region24: #{tpu_custom_call.1} parent=1 // pred_region
      %54 = dma.done [#allocation5], 256
    $region25: #{tpu_custom_call.1} parent=1 // pred_fallthru
      _
    %v55 = vld [vmem:[#allocation2] sm:$0xff]
    %v56 = vld [vmem:[#allocation2 + $0x8] sm:$0xff]
    %v57 = vld [vmem:[#allocation4] sm:$0xff]
    %v58 = vld [vmem:[#allocation4 + $0x8] sm:$0xff]
    %v59 = vld [vmem:[#allocation6] sm:$0xff]
    %v60 = vld [vmem:[#allocation6 + $0x8] sm:$0xff]
    %v61 = vmul.f32 %v55, %v59
    %v62 = vmul.f32 %v56, %v60
    %65 = vrot.lane.b32.xlu0 %v61, 112
    %v66 = vpop.permute.xlu0 %65
    %67 = vrot.lane.b32.xlu0 %v62, 112
    %v68 = vpop.permute.xlu0 %67
    %v71 = vadd.f32 %v61, %v66
    %v72 = vadd.f32 %v62, %v68
    %v73 = vmul.f32 %v57, %v71
    %v74 = vmul.f32 %v58, %v72
    %77 = vrot.lane.b32.xlu0 %v59, 112
    %v78 = vpop.permute.xlu0 %77
    %79 = vrot.lane.b32.xlu0 %v60, 112
    %v80 = vpop.permute.xlu0 %79
    %v83 = vmul.f32 %v55, %v78
    %v84 = vmul.f32 %v56, %v80
    %85 = vrot.lane.b32.xlu0 %v59, 16
    %v86 = vpop.permute.xlu0 %85
    %87 = vrot.lane.b32.xlu0 %v60, 16
    %v88 = vpop.permute.xlu0 %87
    %v91 = vmul.f32 %v55, %v86
    %v92 = vmul.f32 %v56, %v88
    %95 = vrot.lane.b32.xlu0 %v91, 112
    %v96 = vpop.permute.xlu0 %95
    %97 = vrot.lane.b32.xlu0 %v92, 112
    %v98 = vpop.permute.xlu0 %97
    %v101 = vsub.f32 %v83, %v96
    %v102 = vsub.f32 %v84, %v98
    %105 = vrot.lane.b32.xlu0 %v101, 16
    %v106 = vpop.permute.xlu0 %105
    %107 = vrot.lane.b32.xlu0 %v102, 16
    %v108 = vpop.permute.xlu0 %107
    %v111 = vmul.f32 %v57, %v106
    %v112 = vmul.f32 %v58, %v108
    %115 = vrot.lane.b32.xlu0 %v111, 112
    %v116 = vpop.permute.xlu0 %115
    %117 = vrot.lane.b32.xlu0 %v112, 112
    %v118 = vpop.permute.xlu0 %117
    %v121 = vadd.f32 %v73, %v116
    %v122 = vadd.f32 %v74, %v118
    %vm123 = vcmask 130048
    %v124 = vsel %vm123, %v121, 0.0
    %125 = vadd.xlane.f32.xlu0 %v124
    %v126 = vpop.xlane.xlu0 %125
    %v127 = vsel %vm123, %v122, 0.0
    %128 = vadd.xlane.f32.xlu0 %v127
    %v129 = vpop.xlane.xlu0 %128
    %v133 = vunpack.c.l.s4 269488144
    %v134 = vunpack.c.0.s8 %v133
    %v135 = vlaneseq
    %v136 = vshrl.u32 %v135, 7
    %v137 = vsub.s32 %v134, %v136
    %v138 = vrot.slane %v126, %v137
    %v140 = vunpack.c.l.s4 842150450
    %v141 = vunpack.c.0.s8 %v140
    %v142 = vlaneseq
    %v143 = vshrl.u32 %v142, 7
    %v144 = vsub.s32 %v141, %v143
    %v145 = vrot.slane %v126, %v144
    %v147 = vunpack.c.l.s4 1414812756
    %v148 = vunpack.c.0.s8 %v147
    %v149 = vlaneseq
    %v150 = vshrl.u32 %v149, 7
    %v151 = vsub.s32 %v148, %v150
    %v152 = vrot.slane %v126, %v151
    %v154 = vunpack.c.l.s4 1987475062
    %v155 = vunpack.c.0.s8 %v154
    %v156 = vlaneseq
    %v157 = vshrl.u32 %v156, 7
    %v158 = vsub.s32 %v155, %v157
    %v159 = vrot.slane %v126, %v158
    %v161 = vunpack.c.l.s4 269488144
    %v162 = vunpack.c.0.s8 %v161
    %v163 = vlaneseq
    %v164 = vshrl.u32 %v163, 7
    %v165 = vsub.s32 %v162, %v164
    %v166 = vrot.slane %v129, %v165
    %v168 = vunpack.c.l.s4 842150450
    %v169 = vunpack.c.0.s8 %v168
    %v170 = vlaneseq
    %v171 = vshrl.u32 %v170, 7
    %v172 = vsub.s32 %v169, %v171
    %v173 = vrot.slane %v129, %v172
    %v175 = vunpack.c.l.s4 1414812756
    %v176 = vunpack.c.0.s8 %v175
    %v177 = vlaneseq
    %v178 = vshrl.u32 %v177, 7
    %v179 = vsub.s32 %v176, %v178
    %v180 = vrot.slane %v129, %v179
    %v182 = vunpack.c.l.s4 1987475062
    %v183 = vunpack.c.0.s8 %v182
    %v184 = vlaneseq
    %v185 = vshrl.u32 %v184, 7
    %v186 = vsub.s32 %v183, %v185
    %v187 = vrot.slane %v129, %v186
    %v189 = vunpack.c.l.s4 1983009808
    %v190 = vunpack.c.0.s8 %v189
    %v191 = vlaneseq
    %v192 = vshrl.u32 %v191, 7
    %v193 = vsub.s32 %v190, %v192
    %v194 = vrot.slane %v138, %v193
    %v196 = vunpack.c.l.s4 1983009808
    %v197 = vunpack.c.0.s8 %v196
    %v198 = vlaneseq
    %v199 = vshrl.u32 %v198, 7
    %v200 = vsub.s32 %v197, %v199
    %v201 = vrot.slane %v145, %v200
    %v203 = vunpack.c.l.s4 1983009808
    %v204 = vunpack.c.0.s8 %v203
    %v205 = vlaneseq
    %v206 = vshrl.u32 %v205, 7
    %v207 = vsub.s32 %v204, %v206
    %v208 = vrot.slane %v152, %v207
    %v210 = vunpack.c.l.s4 1983009808
    %v211 = vunpack.c.0.s8 %v210
    %v212 = vlaneseq
    %v213 = vshrl.u32 %v212, 7
    %v214 = vsub.s32 %v211, %v213
    %v215 = vrot.slane %v159, %v214
    %v217 = vunpack.c.l.s4 1983009808
    %v218 = vunpack.c.0.s8 %v217
    %v219 = vlaneseq
    %v220 = vshrl.u32 %v219, 7
    %v221 = vsub.s32 %v218, %v220
    %v222 = vrot.slane %v166, %v221
    %v224 = vunpack.c.l.s4 1983009808
    %v225 = vunpack.c.0.s8 %v224
    %v226 = vlaneseq
    %v227 = vshrl.u32 %v226, 7
    %v228 = vsub.s32 %v225, %v227
    %v229 = vrot.slane %v173, %v228
    %v231 = vunpack.c.l.s4 1983009808
    %v232 = vunpack.c.0.s8 %v231
    %v233 = vlaneseq
    %v234 = vshrl.u32 %v233, 7
    %v235 = vsub.s32 %v232, %v234
    %v236 = vrot.slane %v180, %v235
    %v238 = vunpack.c.l.s4 1983009808
    %v239 = vunpack.c.0.s8 %v238
    %v240 = vlaneseq
    %v241 = vshrl.u32 %v240, 7
    %v242 = vsub.s32 %v239, %v241
    %v243 = vrot.slane %v187, %v242
    %244 = vset.pattern.permute.xlu0 0
    %245 = vperm.xlu0 %244, %v194
    %v246 = vpop.permute.xlu0 %245
    %247 = vset.pattern.permute.xlu0 0
    %248 = vperm.xlu0 %247, %v201
    %v249 = vpop.permute.xlu0 %248
    %250 = vset.pattern.permute.xlu0 0
    %251 = vperm.xlu0 %250, %v208
    %v252 = vpop.permute.xlu0 %251
    %253 = vset.pattern.permute.xlu0 0
    %254 = vperm.xlu0 %253, %v215
    %v255 = vpop.permute.xlu0 %254
    %256 = vset.pattern.permute.xlu0 0
    %257 = vperm.xlu0 %256, %v222
    %v258 = vpop.permute.xlu0 %257
    %259 = vset.pattern.permute.xlu0 0
    %260 = vperm.xlu0 %259, %v229
    %v261 = vpop.permute.xlu0 %260
    %262 = vset.pattern.permute.xlu0 0
    %263 = vperm.xlu0 %262, %v236
    %v264 = vpop.permute.xlu0 %263
    %265 = vset.pattern.permute.xlu0 0
    %266 = vperm.xlu0 %265, %v243
    %v267 = vpop.permute.xlu0 %266
    %v268 = vlaneseq
    %v269 = vand.u32 %v268, 127
    %v270 = vlaneseq
    %v271 = vshrl.u32 %v270, 7
    %v272 = vsub.s32 %v269, %v271
    %v273 = vrot.slane %v246, %v272
    %v274 = vlaneseq
    %v275 = vshrl.u32 %v274, 7
    %v276 = vsub.s32 %v269, %v275
    %v277 = vrot.slane %v249, %v276
    %v278 = vlaneseq
    %v279 = vshrl.u32 %v278, 7
    %v280 = vsub.s32 %v269, %v279
    %v281 = vrot.slane %v252, %v280
    %v282 = vlaneseq
    %v283 = vshrl.u32 %v282, 7
    %v284 = vsub.s32 %v269, %v283
    %v285 = vrot.slane %v255, %v284
    %v286 = vlaneseq
    %v287 = vshrl.u32 %v286, 7
    %v288 = vsub.s32 %v269, %v287
    %v289 = vrot.slane %v258, %v288
    %v290 = vlaneseq
    %v291 = vshrl.u32 %v290, 7
    %v292 = vsub.s32 %v269, %v291
    %v293 = vrot.slane %v261, %v292
    %v294 = vlaneseq
    %v295 = vshrl.u32 %v294, 7
    %v296 = vsub.s32 %v269, %v295
    %v297 = vrot.slane %v264, %v296
    %v298 = vlaneseq
    %v299 = vshrl.u32 %v298, 7
    %v300 = vsub.s32 %v269, %v299
    %v301 = vrot.slane %v267, %v300
    %vm302 = vcmask 1041409
    %v303 = vsel %vm302, %v277, %v273
    %vm304 = vcmask 1042434
    %v305 = vsel %vm304, %v281, %v303
    %vm306 = vcmask 1043459
    %v307 = vsel %vm306, %v285, %v305
    %vm308 = vcmask 1044484
    %v309 = vsel %vm308, %v289, %v307
    %vm310 = vcmask 1045509
    %v311 = vsel %vm310, %v293, %v309
    %vm312 = vcmask 1046534
    %v313 = vsel %vm312, %v297, %v311
    %vm314 = vcmask 1047559
    %v315 = vsel %vm314, %v301, %v313
    %vm317 = vcmask 15360
    %318 = vst.msk [vmem:[%s3] sm:$0xff] %vm317, %v315
    // Predicated region
    $region26: #{tpu_custom_call.1} parent=1 // pred_check
      _
    $region27: #{tpu_custom_call.1} parent=1 // pred_check_branch
      %320 = sbr.rel (0) target = $region29
    $region28: #{tpu_custom_call.1} parent=1 // pred_region
      _
    $region29: #{tpu_custom_call.1} parent=1 // pred_fallthru
      _
    // Predicated region
    $region30: #{tpu_custom_call.1} parent=1 // pred_check
      _
    $region31: #{tpu_custom_call.1} parent=1 // pred_check_branch
      %322 = sbr.rel (0) target = $region33
    $region32: #{tpu_custom_call.1} parent=1 // pred_region
      _
    $region33: #{tpu_custom_call.1} parent=1 // pred_fallthru
      _
    %323 = vsyncpa [#allocation3], 1
    %324 = vsyncpa [#allocation5], 1

</llo_original>
